<compile_context>
chip_gen: v6e
topology: v6e:2x2x1
jax: 0.10.0
libtpu: 0.0.40
codegen_flags: <defaults>
</compile_context>

<pallas_src>
import functools
import math

import jax
import jax.numpy as jnp
from jax.experimental import pallas as pl
from jax.experimental.pallas import tpu as pltpu

# Above v5e's 16 MiB scoped default, below v7x's 64 MiB physical (headroom).
_VMEM_LIMIT = 48 * 1024 * 1024


def _layer_norm(x, gamma, beta, eps=1e-6):
    mu = jnp.mean(x, axis=-1, keepdims=True)
    var = jnp.mean(jnp.square(x - mu), axis=-1, keepdims=True)
    return (x - mu) * jax.lax.rsqrt(var + eps) * gamma + beta


# ---------------------------------------------------------------------------
# Single-buffering feature probe (pipeline_mode=pl.Buffered(1))
# ---------------------------------------------------------------------------
_SINGLE_BUFFER_OK = None


def _probe_single_buffer():
    def k(x_ref, o_ref):
        o_ref[...] = x_ref[...] + 1.0
    try:
        spec = pl.BlockSpec((8, 128), lambda i: (0, 0),
                            pipeline_mode=pl.Buffered(1))
        out = pl.pallas_call(
            k,
            grid=(1,),
            in_specs=[spec],
            out_specs=pl.BlockSpec((8, 128), lambda i: (0, 0)),
            out_shape=jax.ShapeDtypeStruct((8, 128), jnp.float32),
        )(jnp.zeros((8, 128), jnp.float32))
        jax.block_until_ready(out)
        return True
    except Exception:
        return False


def _single_buffer_ok():
    global _SINGLE_BUFFER_OK
    if _SINGLE_BUFFER_OK is None:
        _SINGLE_BUFFER_OK = _probe_single_buffer()
    return _SINGLE_BUFFER_OK


def _invariant_spec(shape, index_map):
    """BlockSpec for a grid-invariant operand: single-buffered when supported
    (halves its VMEM reservation vs. the default double-buffering)."""
    if _single_buffer_ok():
        return pl.BlockSpec(shape, index_map, pipeline_mode=pl.Buffered(1))
    return pl.BlockSpec(shape, index_map)


# ---------------------------------------------------------------------------
# Front-end kernel: positional encoding (+ scale) + LayerNorm
# ---------------------------------------------------------------------------
def _frontend_kernel(x_ref, pos_ref, g_ref, b_ref, out_ref, *, scale_emb, d_model):
    x = x_ref[0]                                            # (S, D) f32 embeddings
    if scale_emb:
        x = x * (d_model ** 0.5)
    x = x + pos_ref[...]
    out_ref[0] = _layer_norm(x, g_ref[...], b_ref[...]).astype(out_ref.dtype)


def encoder_frontend(src_seq, emb_table, pos_table, ln_g, ln_b, *,
                     scale_emb, d_model):
    """Embedding gather (XLA) + positional encoding + LayerNorm (Pallas).

    The gather is a real row gather (no one-hot matmul, no vocab table in VMEM).
    # TODO(synk): an in-kernel scalar-prefetched DMA row gather would avoid a
    #             second HBM pass over (B, S, D) for very long sequences.
    """
    B, S = src_seq.shape
    D = emb_table.shape[1]
    x_emb = jnp.take(emb_table, src_seq.astype(jnp.int32), axis=0)   # (B, S, D) f32
    pos = pos_table[:S].astype(jnp.float32)                          # (S, D)

    kernel = functools.partial(_frontend_kernel,
                               scale_emb=scale_emb, d_model=d_model)
    grid_spec = pltpu.PrefetchScalarGridSpec(
        num_scalar_prefetch=0,
        grid=(B,),
        in_specs=[
            pl.BlockSpec((1, S, D), lambda b: (b, 0, 0)),      # gathered embeddings
            _invariant_spec((S, D), lambda b: (0, 0)),         # positional table
            _invariant_spec((1, D), lambda b: (0, 0)),         # LN gamma
            _invariant_spec((1, D), lambda b: (0, 0)),         # LN beta
        ],
        out_specs=pl.BlockSpec((1, S, D), lambda b: (b, 0, 0)),
    )
    return pl.pallas_call(
        kernel,
        grid_spec=grid_spec,
        out_shape=jax.ShapeDtypeStruct((B, S, D), jnp.bfloat16),   # bf16 activations
        compiler_params=pltpu.CompilerParams(
            dimension_semantics=("parallel",),
            vmem_limit_bytes=_VMEM_LIMIT),
    )(x_emb, pos, ln_g, ln_b)


# ---------------------------------------------------------------------------
# Encoder layer kernel (MHA + PosFFN, post-LayerNorm)
# ---------------------------------------------------------------------------
def _make_encoder_layer_kernel(n_head, d_k, d_v, return_attn, approx_recip=True):
    f32, bf16 = jnp.float32, jnp.bfloat16
    inv_sqrt_dk = 1.0 / math.sqrt(d_k)

    def kernel(xq_ref, xkv_ref, bias_ref,
               wq_ref, wk_ref, wv_ref, wo_ref, ln1_g_ref, ln1_b_ref,
               w1_ref, b1_ref, w2_ref, b2_ref, ln2_g_ref, ln2_b_ref,
               *rest):
        if return_attn:
            out_ref, attn_ref, k_scr, v_scr = rest
        else:
            out_ref, k_scr, v_scr = rest
            attn_ref = None

        qi = pl.program_id(1)

        # ---- K/V projections once per batch element (query-tile 0).
        #      K stored pre-transposed (H, d_k, S): the per-tile QK^T is then a
        #      canonical batched matmul with no steady-state relayout.
        #      NOTE: relies on grid order b-outer / q-inner ("arbitrary" q axis).
        @pl.when(qi == 0)
        def _():
            xkv = xkv_ref[0]                                               # (S, D) bf16
            k = jnp.dot(xkv, wk_ref[...], preferred_element_type=f32)      # (S, H*dk)
            v = jnp.dot(xkv, wv_ref[...], preferred_element_type=f32)      # (S, H*dv)
            k_scr[...] = jnp.stack(
                [k[:, h * d_k:(h + 1) * d_k].T for h in range(n_head)],
                axis=0).astype(bf16)                                       # (H, dk, S)
            v_scr[...] = jnp.stack(
                [v[:, h * d_v:(h + 1) * d_v] for h in range(n_head)],
                axis=0).astype(bf16)                                       # (H, S, dv)

        # ---- current query tile
        xq = xq_ref[0]                                                     # (TQ, D) bf16
        x_res = xq.astype(f32)
        q = jnp.dot(xq, wq_ref[...], preferred_element_type=f32)          # (TQ, H*dk)
        q = q * inv_sqrt_dk          # scale q (TQ*H*dk) instead of scores (H*TQ*S)
        # head split: register-level stack (no scratch, no masked partial stores)
        qh = jnp.stack([q[:, h * d_k:(h + 1) * d_k] for h in range(n_head)],
                       axis=0).astype(bf16)                                # (H, TQ, dk)

        # ---- scaled dot-product attention, all heads batched on the MXU
        scores = jnp.einsum("hqd,hds->hqs", qh, k_scr[...],
                            preferred_element_type=f32)                    # (H, TQ, S)
        scores = scores + bias_ref[...]                                    # additive key mask
        m = jnp.max(scores, axis=-1, keepdims=True)
        e = jnp.exp(scores - m)
        # TODO(synk): on v6e/v7x a bf16 exp roughly doubles EUP throughput.
        denom = jnp.sum(e, axis=-1, keepdims=True)
        if approx_recip:
            p = e * pl.reciprocal(denom, approx=True)
        else:
            p = e / denom

        if return_attn:
            attn_ref[0] = p.astype(attn_ref.dtype)

        ctx = jnp.einsum("hqs,hsd->hqd", p.astype(bf16), v_scr[...],
                         preferred_element_type=f32)                       # (H, TQ, dv)
        # merge heads (lane concat) and do ONE wide output projection
        ctx_m = jnp.concatenate([ctx[h] for h in range(n_head)],
                                axis=-1).astype(bf16)                      # (TQ, H*dv)
        attn_out = jnp.dot(ctx_m, wo_ref[...], preferred_element_type=f32)  # (TQ, D)
        y = _layer_norm(attn_out + x_res, ln1_g_ref[...], ln1_b_ref[...])

        # ---- position-wise feed-forward (post-LN)
        h1 = jnp.dot(y.astype(bf16), w1_ref[...], preferred_element_type=f32)
        h1 = jnp.maximum(h1 + b1_ref[...], 0.0)
        h2 = jnp.dot(h1.astype(bf16), w2_ref[...], preferred_element_type=f32)
        z = _layer_norm(h2 + b2_ref[...] + y, ln2_g_ref[...], ln2_b_ref[...])

        out_ref[0] = z.astype(out_ref.dtype)

    return kernel


def encoder_layer(x, bias, params, *, n_head, d_k, d_v, tq=None,
                  return_attn=False, approx_recip=True):
    """x: (B,S,D) bf16 activations; bias: (B,1,S) f32 additive key mask
    (0 = keep, -1e9 = pad)."""
    B, S, D = x.shape
    d_inner = params["w1"].shape[1]
    if tq is None:
        # TODO(synk): tq=256 on v6e (fills the 256-row MXU); tq=64 or a
        #             flash-style key-chunked softmax on v7x (64 MiB VMEM).
        tq = min(128, S)
    assert S % tq == 0, "sequence length must be divisible by the query tile"
    nq = S // tq

    kernel = _make_encoder_layer_kernel(n_head, d_k, d_v, return_attn,
                                        approx_recip)

    def inv(shape):
        return _invariant_spec(shape, lambda b, q: (0,) * len(shape))

    in_specs = [
        pl.BlockSpec((1, tq, D), lambda b, q: (b, q, 0)),     # x (query tile)
        # xkv changes with b -> keep default double-buffering (bf16, small)
        pl.BlockSpec((1, S, D), lambda b, q: (b, 0, 0)),      # x (full seq, K/V side)
        pl.BlockSpec((1, 1, S), lambda b, q: (b, 0, 0)),      # additive key-mask bias
        inv((D, n_head * d_k)),                               # wq
        inv((D, n_head * d_k)),                               # wk
        inv((D, n_head * d_v)),                               # wv
        inv((n_head * d_v, D)),                               # wo
        inv((1, D)), inv((1, D)),                             # ln1 gamma/beta
        inv((D, d_inner)), inv((1, d_inner)),                 # w1, b1
        inv((d_inner, D)), inv((1, D)),                       # w2, b2
        inv((1, D)), inv((1, D)),                             # ln2 gamma/beta
    ]
    out_spec_x = pl.BlockSpec((1, tq, D), lambda b, q: (b, q, 0))
    out_shape_x = jax.ShapeDtypeStruct((B, S, D), jnp.bfloat16)

    if return_attn:
        out_specs = (out_spec_x,
                     pl.BlockSpec((1, n_head, tq, S), lambda b, q: (b, 0, q, 0)))
        out_shape = (out_shape_x,
                     jax.ShapeDtypeStruct((B, n_head, S, S), jnp.bfloat16))
    else:
        out_specs = out_spec_x
        out_shape = out_shape_x

    scratch_shapes = [
        pltpu.VMEM((n_head, d_k, S), jnp.bfloat16),           # K^T (head, d_k, S)
        pltpu.VMEM((n_head, S, d_v), jnp.bfloat16),           # V   (head, S, d_v)
    ]

    grid_spec = pltpu.PrefetchScalarGridSpec(
        num_scalar_prefetch=0,
        grid=(B, nq),               # b outer (parallel), q inner (K/V carry)
        in_specs=in_specs,
        out_specs=out_specs,
        scratch_shapes=scratch_shapes,
    )

    fn = pl.pallas_call(
        kernel,
        grid_spec=grid_spec,
        out_shape=out_shape,
        compiler_params=pltpu.CompilerParams(
            # TODO(synk): pltpu.CORE_PARALLEL on the batch axis for v7x.
            dimension_semantics=("parallel", "arbitrary"),
            vmem_limit_bytes=_VMEM_LIMIT),
    )
    return fn(
        x, x, bias,
        params["wq"], params["wk"], params["wv"], params["wo"],
        params["ln1_g"], params["ln1_b"],
        params["w1"], params["b1"], params["w2"], params["b2"],
        params["ln2_g"], params["ln2_b"],
    )


# ---------------------------------------------------------------------------
# Full Encoder forward
# ---------------------------------------------------------------------------
def encoder_forward(src_seq, src_mask, params, *, n_head, d_k, d_v,
                    scale_emb=False, return_attns=False, tq=None):
    d_model = params["emb"].shape[1]
    B, S = src_seq.shape
    x = encoder_frontend(src_seq, params["emb"], params["pos_table"],
                         params["ln_g"], params["ln_b"],
                         scale_emb=scale_emb, d_model=d_model)
    if src_mask is None:
        bias = jnp.zeros((B, 1, S), jnp.float32)
    else:
        if src_mask.ndim == 2:
            src_mask = src_mask[:, None, :]
        bias = (src_mask.astype(jnp.float32) - 1.0) * 1e9    # 0 keep / -1e9 pad

    attns = []
    for lp in params["layers"]:
        if return_attns:
            x, a = encoder_layer(x, bias, lp, n_head=n_head, d_k=d_k, d_v=d_v,
                                 tq=tq, return_attn=True)
            attns.append(a)
        else:
            x = encoder_layer(x, bias, lp, n_head=n_head, d_k=d_k, d_v=d_v,
                              tq=tq, return_attn=False)
    if return_attns:
        return x, attns
    return (x,)


# ---------------------------------------------------------------------------
# Pure-JAX reference (mirrors the PyTorch math; bf16 matmul operands / bf16
# inter-layer activation carry with f32 accumulation, matching the kernels)
# ---------------------------------------------------------------------------
def _ref_layer(x, mask, p, n_head, d_k, d_v):
    bf16, f32 = jnp.bfloat16, jnp.float32
    B, S, D = x.shape
    xb = x.astype(bf16)
    q = jnp.dot(xb, p["wq"], preferred_element_type=f32).reshape(B, S, n_head, d_k)
    k = jnp.dot(xb, p["wk"], preferred_element_type=f32).reshape(B, S, n_head, d_k)
    v = jnp.dot(xb, p["wv"], preferred_element_type=f32).reshape(B, S, n_head, d_v)
    q = jnp.transpose(q, (0, 2, 1, 3))
    k = jnp.transpose(k, (0, 2, 1, 3))
    v = jnp.transpose(v, (0, 2, 1, 3))
    scores = jnp.einsum("bhqd,bhkd->bhqk", q.astype(bf16), k.astype(bf16),
                        preferred_element_type=f32) * (1.0 / math.sqrt(d_k))
    scores = jnp.where(mask[:, :, None, :] > 0.5, scores, -1e9)
    attn = jax.nn.softmax(scores, axis=-1)
    ctx = jnp.einsum("bhqk,bhkd->bhqd", attn.astype(bf16), v.astype(bf16),
                     preferred_element_type=f32)
    ctx = jnp.transpose(ctx.astype(bf16), (0, 2, 1, 3)).reshape(B, S, n_head * d_v)
    y = _layer_norm(jnp.dot(ctx, p["wo"], preferred_element_type=f32) + x,
                    p["ln1_g"], p["ln1_b"])
    h1 = jnp.maximum(
        jnp.dot(y.astype(bf16), p["w1"], preferred_element_type=f32) + p["b1"], 0.0)
    h2 = jnp.dot(h1.astype(bf16), p["w2"], preferred_element_type=f32) + p["b2"]
    z = _layer_norm(h2 + y, p["ln2_g"], p["ln2_b"])
    return z, attn


def encoder_forward_ref(src_seq, src_mask, params, *, n_head, d_k, d_v,
                        scale_emb=False, return_attns=False):
    bf16 = jnp.bfloat16
    d_model = params["emb"].shape[1]
    S = src_seq.shape[1]
    x = params["emb"][src_seq]
    if scale_emb:
        x = x * (d_model ** 0.5)
    x = x + params["pos_table"][:S][None]
    x = _layer_norm(x, params["ln_g"], params["ln_b"])
    x = x.astype(bf16).astype(jnp.float32)          # mirror the kernels' bf16 carry
    mask = src_mask.astype(jnp.float32)
    attns = []
    for lp in params["layers"]:
        x, a = _ref_layer(x, mask, lp, n_head, d_k, d_v)
        x = x.astype(bf16).astype(jnp.float32)
        attns.append(a)
    if return_attns:
        return x, attns
    return (x,)


# ---------------------------------------------------------------------------
if __name__ == "__main__":
    B, S = 2, 16
    n_vocab, pad_idx = 64, 0
    d_model = 32
    d_inner = 64
    n_head, d_k, d_v = 4, 8, 8
    n_layers = 2
    n_position = 32
    scale_emb = False

    key = jax.random.PRNGKey(0)
    keys = jax.random.split(key, 4 + 6 * n_layers)
    ki = iter(keys)

    def init(k, shape, fan_in, dtype=jnp.bfloat16):
        return (jax.random.normal(k, shape, jnp.float32)
                / math.sqrt(fan_in)).astype(dtype)

    emb = jax.random.normal(next(ki), (n_vocab, d_model), jnp.float32) * 0.1
    emb = emb.at[pad_idx].set(0.0)                       # padding_idx row = 0

    # sinusoidal positional table (matches PositionalEncoding)
    pos = jnp.arange(n_position, dtype=jnp.float32)[:, None]
    i = jnp.arange(d_model, dtype=jnp.float32)[None, :]
    angle = pos / jnp.power(10000.0, 2.0 * jnp.floor(i / 2.0) / d_model)
    pos_table = jnp.where((jnp.arange(d_model) % 2) == 0,
                          jnp.sin(angle), jnp.cos(angle)).astype(jnp.float32)

    layers = []
    for _ in range(n_layers):
        layers.append({
            "wq": init(next(ki), (d_model, n_head * d_k), d_model),
            "wk": init(next(ki), (d_model, n_head * d_k), d_model),
            "wv": init(next(ki), (d_model, n_head * d_v), d_model),
            "wo": init(next(ki), (n_head * d_v, d_model), n_head * d_v),
            "ln1_g": jnp.ones((1, d_model), jnp.float32),
            "ln1_b": jnp.zeros((1, d_model), jnp.float32),
            "w1": init(next(ki), (d_model, d_inner), d_model),
            "b1": jnp.zeros((1, d_inner), jnp.float32),
            "w2": init(next(ki), (d_inner, d_model), d_inner),
            "b2": jnp.zeros((1, d_model), jnp.float32),
            "ln2_g": jnp.ones((1, d_model), jnp.float32),
            "ln2_b": jnp.zeros((1, d_model), jnp.float32),
        })

    params = {
        "emb": emb,
        "pos_table": pos_table,
        "ln_g": jnp.ones((1, d_model), jnp.float32),
        "ln_b": jnp.zeros((1, d_model), jnp.float32),
        "layers": layers,
    }

    src_seq = jax.random.randint(next(ki), (B, S), 1, n_vocab).astype(jnp.int32)
    # pad the tail of the second sequence to exercise the attention mask
    tail = jnp.arange(S) >= (S - 4)
    src_seq = src_seq.at[1].set(jnp.where(tail, pad_idx, src_seq[1]))
    src_mask = (src_seq != pad_idx)[:, None, :]          # (B, 1, S)

    kw = dict(n_head=n_head, d_k=d_k, d_v=d_v, scale_emb=scale_emb)

    # fast path: no attention maps materialised (no O(S^2) writeback)
    (out,) = encoder_forward(src_seq, src_mask, params, tq=8,
                             return_attns=False, **kw)
    jax.block_until_ready(out)

    # attention-map path (bf16 attn maps)
    out_a, attns = encoder_forward(src_seq, src_mask, params, tq=8,
                                   return_attns=True, **kw)
    jax.block_until_ready((out_a, attns))

    # reference
    out_ref, attns_ref = encoder_forward_ref(src_seq, src_mask, params,
                                             return_attns=True, **kw)

    out_f = out.astype(jnp.float32)
    out_a_f = out_a.astype(jnp.float32)
    assert jnp.allclose(out_f, out_ref, atol=2e-2, rtol=2e-2), \
        float(jnp.max(jnp.abs(out_f - out_ref)))
    assert jnp.allclose(out_a_f, out_ref, atol=2e-2, rtol=2e-2), \
        float(jnp.max(jnp.abs(out_a_f - out_ref)))
    for a, ar in zip(attns, attns_ref):
        assert jnp.allclose(a.astype(jnp.float32), ar, atol=2e-2, rtol=2e-2), \
            float(jnp.max(jnp.abs(a.astype(jnp.float32) - ar)))

    print("KERNEL_OK")
</pallas_src>

<mosaic_0001>
module attributes {stable_mosaic.version = 11 : i64} {
  func.func @k(%arg0: i32, %arg1: memref<8x128xf32, #tpu.memory_space<vmem>>, %arg2: memref<8x128xf32, #tpu.memory_space<vmem>>) attributes {dimension_semantics = [#tpu.dimension_semantics<arbitrary>], iteration_bounds = array<i64: 1>, scalar_prefetch = 0 : i64, scratch_operands = 0 : i64, tpu.core_type = #tpu.core_type<tc>, window_params = [{pipeline_mode = #tpu.pipeline_mode<synchronous>, transform_indices = @transform_0, window_bounds = array<i64: 8, 128>}, {pipeline_mode = #tpu.pipeline_mode<synchronous>, transform_indices = @transform_1, window_bounds = array<i64: 8, 128>}]} {
    %c0 = arith.constant 0 : index
    %c0_0 = arith.constant 0 : index
    %0 = vector.load %arg1[%c0, %c0_0] : memref<8x128xf32, #tpu.memory_space<vmem>>, vector<8x128xf32>
    %cst = arith.constant 1.000000e+00 : f32
    %1 = vector.broadcast %cst : f32 to vector<8x128xf32>
    %2 = arith.addf %0, %1 : vector<8x128xf32>
    %c0_1 = arith.constant 0 : index
    %c0_2 = arith.constant 0 : index
    %3 = vector.load %arg2[%c0_1, %c0_2] : memref<8x128xf32, #tpu.memory_space<vmem>>, vector<8x128xf32>
    tpu.vector_store %arg2[%c0_1, %c0_2], %2 {strides = array<i32>} : memref<8x128xf32, #tpu.memory_space<vmem>>, vector<8x128xf32>,
    return
  }
  func.func @transform_0(%arg0: i32) -> (i32, i32) {
    %c0_i32 = arith.constant 0 : i32
    %c0_i32_0 = arith.constant 0 : i32
    %c0_i32_1 = arith.constant 0 : i32
    return %c0_i32, %c0_i32_0 : i32, i32
  }
  func.func @transform_1(%arg0: i32) -> (i32, i32) {
    %c0_i32 = arith.constant 0 : i32
    %c0_i32_0 = arith.constant 0 : i32
    %c0_i32_1 = arith.constant 0 : i32
    return %c0_i32, %c0_i32_0 : i32, i32
  }
}

module attributes {stable_mosaic.version = 11 : i64} {
  func.func @_frontend_kernel(%arg0: i32, %arg1: memref<1x16x32xf32, #tpu.memory_space<vmem>>, %arg2: memref<16x32xf32, #tpu.memory_space<vmem>>, %arg3: memref<1x32xf32, #tpu.memory_space<vmem>>, %arg4: memref<1x32xf32, #tpu.memory_space<vmem>>, %arg5: memref<1x16x32xbf16, #tpu.memory_space<vmem>>) attributes {dimension_semantics = [#tpu.dimension_semantics<parallel>], iteration_bounds = array<i64: 2>, scalar_prefetch = 0 : i64, scratch_operands = 0 : i64, tpu.core_type = #tpu.core_type<tc>, window_params = [{transform_indices = @transform_0, window_bounds = array<i64: 1, 16, 32>}, {pipeline_mode = #tpu.pipeline_mode<synchronous>, transform_indices = @transform_1, window_bounds = array<i64: 16, 32>}, {pipeline_mode = #tpu.pipeline_mode<synchronous>, transform_indices = @transform_2, window_bounds = array<i64: 1, 32>}, {pipeline_mode = #tpu.pipeline_mode<synchronous>, transform_indices = @transform_3, window_bounds = array<i64: 1, 32>}, {transform_indices = @transform_4, window_bounds = array<i64: 1, 16, 32>}]} {
    %c0 = arith.constant 0 : index
    %c0_0 = arith.constant 0 : index
    %c0_1 = arith.constant 0 : index
    %0 = vector.load %arg1[%c0, %c0_0, %c0_1] : memref<1x16x32xf32, #tpu.memory_space<vmem>>, vector<1x16x32xf32>
    %1 = vector.shape_cast %0 : vector<1x16x32xf32> to vector<16x32xf32>
    %c0_2 = arith.constant 0 : index
    %c0_3 = arith.constant 0 : index
    %2 = vector.load %arg2[%c0_2, %c0_3] : memref<16x32xf32, #tpu.memory_space<vmem>>, vector<16x32xf32>
    %3 = arith.addf %1, %2 : vector<16x32xf32>
    %c0_4 = arith.constant 0 : index
    %c0_5 = arith.constant 0 : index
    %4 = vector.load %arg3[%c0_4, %c0_5] : memref<1x32xf32, #tpu.memory_space<vmem>>, vector<1x32xf32>
    %c0_6 = arith.constant 0 : index
    %c0_7 = arith.constant 0 : index
    %5 = vector.load %arg4[%c0_6, %c0_7] : memref<1x32xf32, #tpu.memory_space<vmem>>, vector<1x32xf32>
    %cst = arith.constant dense<0.000000e+00> : vector<16xf32>
    %6 = vector.multi_reduction <add>, %3, %cst [1] : vector<16x32xf32> to vector<16xf32>
    %7 = vector.shape_cast %6 : vector<16xf32> to vector<16x1xf32>
    %cst_8 = arith.constant 3.200000e+01 : f32
    %8 = vector.broadcast %cst_8 : f32 to vector<16x1xf32>
    %9 = arith.divf %7, %8 : vector<16x1xf32>
    %10 = vector.broadcast %9 : vector<16x1xf32> to vector<16x32xf32>
    %11 = arith.subf %3, %10 : vector<16x32xf32>
    %12 = arith.mulf %11, %11 : vector<16x32xf32>
    %cst_9 = arith.constant dense<0.000000e+00> : vector<16xf32>
    %13 = vector.multi_reduction <add>, %12, %cst_9 [1] : vector<16x32xf32> to vector<16xf32>
    %14 = vector.shape_cast %13 : vector<16xf32> to vector<16x1xf32>
    %cst_10 = arith.constant 3.200000e+01 : f32
    %15 = vector.broadcast %cst_10 : f32 to vector<16x1xf32>
    %16 = arith.divf %14, %15 : vector<16x1xf32>
    %17 = vector.broadcast %9 : vector<16x1xf32> to vector<16x32xf32>
    %18 = arith.subf %3, %17 : vector<16x32xf32>
    %cst_11 = arith.constant 9.99999997E-7 : f32
    %19 = vector.broadcast %cst_11 : f32 to vector<16x1xf32>
    %20 = arith.addf %16, %19 : vector<16x1xf32>
    %21 = math.rsqrt %20 : vector<16x1xf32>
    %22 = vector.broadcast %21 : vector<16x1xf32> to vector<16x32xf32>
    %23 = arith.mulf %18, %22 : vector<16x32xf32>
    %24 = vector.broadcast %4 : vector<1x32xf32> to vector<16x32xf32>
    %25 = arith.mulf %23, %24 : vector<16x32xf32>
    %26 = vector.broadcast %5 : vector<1x32xf32> to vector<16x32xf32>
    %27 = arith.addf %25, %26 : vector<16x32xf32>
    %28 = arith.truncf %27 : vector<16x32xf32> to vector<16x32xbf16>
    %c0_12 = arith.constant 0 : index
    %c0_13 = arith.constant 0 : index
    %c0_14 = arith.constant 0 : index
    %29 = vector.load %arg5[%c0_12, %c0_13, %c0_14] : memref<1x16x32xbf16, #tpu.memory_space<vmem>>, vector<1x16x32xbf16>
    %30 = vector.shape_cast %29 : vector<1x16x32xbf16> to vector<16x32xbf16>
    %31 = vector.shape_cast %28 : vector<16x32xbf16> to vector<1x16x32xbf16>
    tpu.vector_store %arg5[%c0_12, %c0_13, %c0_14], %31 {strides = array<i32>} : memref<1x16x32xbf16, #tpu.memory_space<vmem>>, vector<1x16x32xbf16>,
    return
  }
  func.func @transform_0(%arg0: i32) -> (i32, i32, i32) {
    %c0_i32 = arith.constant 0 : i32
    %c0_i32_0 = arith.constant 0 : i32
    %c0_i32_1 = arith.constant 0 : i32
    return %arg0, %c0_i32, %c0_i32_0 : i32, i32, i32
  }
  func.func @transform_1(%arg0: i32) -> (i32, i32) {
    %c0_i32 = arith.constant 0 : i32
    %c0_i32_0 = arith.constant 0 : i32
    %c0_i32_1 = arith.constant 0 : i32
    return %c0_i32, %c0_i32_0 : i32, i32
  }
  func.func @transform_2(%arg0: i32) -> (i32, i32) {
    %c0_i32 = arith.constant 0 : i32
    %c0_i32_0 = arith.constant 0 : i32
    %c0_i32_1 = arith.constant 0 : i32
    return %c0_i32, %c0_i32_0 : i32, i32
  }
  func.func @transform_3(%arg0: i32) -> (i32, i32) {
    %c0_i32 = arith.constant 0 : i32
    %c0_i32_0 = arith.constant 0 : i32
    %c0_i32_1 = arith.constant 0 : i32
    return %c0_i32, %c0_i32_0 : i32, i32
  }
  func.func @transform_4(%arg0: i32) -> (i32, i32, i32) {
    %c0_i32 = arith.constant 0 : i32
    %c0_i32_0 = arith.constant 0 : i32
    %c0_i32_1 = arith.constant 0 : i32
    return %arg0, %c0_i32, %c0_i32_0 : i32, i32, i32
  }
}

</mosaic_0001>

<llo_original>
// kernel: tpu_custom_call.1
$region0: #{tpu_custom_call.1}
  #allocation0 [shape = 'u32[]', space=smem, size = 0x4, offset = 0x4, fixed_abs, tag = 'smem constant byte address 0x4 - core index']
  #allocation1 [shape = 'u32[144,128]{1,0:T(1,128)}', space=vmem, size = 0x12000, scoped, tag = 'internal scratch']
  %s0 = inlined_call_operand.hbm [shape: f32[8,128], index: 0, kind: input, shape index: {}]
  %s1 = inlined_call_operand.hbm [shape: f32[8,128], index: 1, kind: output, shape index: {}]
  %s2 = sld [smem:[#allocation0]]
  $region18: #{tpu_custom_call.1} parent=0
    _
  %s4 = ssub.s32 1, %s2
  %s5 = scalar_select 0, %s4, %s2
  $region1: #{tpu_custom_call.1} parent=0
    #allocation2 [shape = 'u8[4096]{0}', space=vmem, size = 0x1000, scoped, tag = 'input window, operand 0, single buffered']
    #allocation3 [shape = 's32[1]{0}', space=sflag, size = 0x4, scoped, tag = 'scoped memory for tpu_custom_call.1']
    #allocation4 [shape = 's32[1]{0}', space=sflag, size = 0x4, scoped, tag = 'scoped memory for tpu_custom_call.1']
    #allocation5 [shape = 'u8[4096]{0}', space=vmem, size = 0x1000, scoped, tag = 'output window, operand 0, single buffered']
    %6 = vsyncpa [#allocation3], 0
    %7 = vsyncpa [#allocation4], 0
    // Predicated region
    $region2: #{tpu_custom_call.1} parent=1 // pred_check
      _
    $region3: #{tpu_custom_call.1} parent=1 // pred_check_branch
      %9 = sbr.rel (0) target = $region5
    $region4: #{tpu_custom_call.1} parent=1 // pred_region
      %s11 = ssub.s32 128, 128
      %12 = vsyncadd [#allocation3], %s11
      %s14 = sshll.u32 [#allocation2], 4
      %s15 = int_to_ptr.vmem [resolvable:$true] %s14
      %17 = dma.hbm_to_vmem [thread:$0]  %s0, 128, %s15, [#allocation3]
    $region5: #{tpu_custom_call.1} parent=1 // pred_fallthru
      _
    // Predicated region
    $region6: #{tpu_custom_call.1} parent=1 // pred_check
      _
    $region7: #{tpu_custom_call.1} parent=1 // pred_check_branch
      %19 = sbr.rel (0) target = $region9
    $region8: #{tpu_custom_call.1} parent=1 // pred_region
      %20 = dma.done [#allocation3], 128
    $region9: #{tpu_custom_call.1} parent=1 // pred_fallthru
      _
    %v21 = vld [vmem:[#allocation2] sm:$0xff]
    %v22 = vadd.f32 %v21, 1.0
    %23 = vst [vmem:[#allocation5] sm:$0xff] %v22
    // Predicated region
    $region10: #{tpu_custom_call.1} parent=1 // pred_check
      _
    $region11: #{tpu_custom_call.1} parent=1 // pred_check_branch
      %25 = sbr.rel (0) target = $region13
    $region12: #{tpu_custom_call.1} parent=1 // pred_region
      %s27 = ssub.s32 128, 128
      %28 = vsyncadd [#allocation4], %s27
      %s30 = sshll.u32 [#allocation5], 4
      %s31 = int_to_ptr.vmem [resolvable:$true] %s30
      %33 = dma.vmem_to_hbm [thread:$0]  %s31, 128, %s1, [#allocation4]
    $region13: #{tpu_custom_call.1} parent=1 // pred_fallthru
      _
    // Predicated region
    $region14: #{tpu_custom_call.1} parent=1 // pred_check
      _
    $region15: #{tpu_custom_call.1} parent=1 // pred_check_branch
      %35 = sbr.rel (0) target = $region17
    $region16: #{tpu_custom_call.1} parent=1 // pred_region
      %36 = dma.done [#allocation4], 128
    $region17: #{tpu_custom_call.1} parent=1 // pred_fallthru
      _
    %37 = vsyncpa [#allocation3], 1
    %38 = vsyncpa [#allocation4], 1

// kernel: tpu_custom_call.1
$region0: #{tpu_custom_call.1}
  #allocation0 [shape = 'u32[]', space=smem, size = 0x4, offset = 0x4, fixed_abs, tag = 'smem constant byte address 0x4 - core index']
  #allocation1 [shape = 'u32[144,128]{1,0:T(1,128)}', space=vmem, size = 0x12000, scoped, tag = 'internal scratch']
  %s0 = inlined_call_operand.hbm [shape: f32[2,16,32], index: 0, kind: input, shape index: {}]
  %s1 = inlined_call_operand.hbm [shape: f32[16,32], index: 1, kind: input, shape index: {}]
  %s2 = inlined_call_operand.vmem [shape: f32[1,32], index: 2, kind: input, shape index: {}]
  %s3 = inlined_call_operand.vmem [shape: f32[1,32], index: 3, kind: input, shape index: {}]
  %s4 = inlined_call_operand.hbm [shape: bf16[2,16,32], index: 4, kind: output, shape index: {}]
  %s5 = sld [smem:[#allocation0]]
  $region57: #{tpu_custom_call.1} parent=0
    _
  %s7 = ssub.s32 1, %s5
  %s8 = scalar_select 0, %s7, %s5
  $region1: #{tpu_custom_call.1} parent=0
    #allocation2 [shape = 'u8[16384]{0}', space=vmem, size = 0x4000, scoped, tag = 'input window, operand 0']
    #allocation3 [shape = 's32[2]{0}', space=sflag, size = 0x8, scoped, tag = 'scoped memory for tpu_custom_call.1']
    #allocation4 [shape = 's32[2]{0}', space=sflag, size = 0x8, scoped, tag = 'scoped memory for tpu_custom_call.1']
    #allocation5 [shape = 'u8[8192]{0}', space=vmem, size = 0x2000, scoped, tag = 'input window, operand 1, single buffered']
    #allocation6 [shape = 's32[1]{0}', space=sflag, size = 0x4, scoped, tag = 'scoped memory for tpu_custom_call.1']
    #allocation7 [shape = 'u8[8192]{0}', space=vmem, size = 0x2000, scoped, tag = 'output window, operand 0']
    %9 = vsyncpa [#allocation3], 0
    %s10 = scalar_lea.sflag [#allocation3], 1
    %11 = vsyncpa %s10, 0
    %12 = vsyncpa [#allocation6], 0
    %13 = vsyncpa [#allocation4], 0
    %s14 = scalar_lea.sflag [#allocation4], 1
    %15 = vsyncpa %s14, 0
    loop: start=0, step=1, limit=4
    $region2: #{tpu_custom_call.1} parent=1 // loop_pre_header
      _
    $region3: #{tpu_custom_call.1} parent=1 // loop_header
      %s17 = sphi 0, %s21
      %p18 = scmp.ge.s32.totalorder %s17, 4
      %s27 = sphi 0, %s29
      %s30 = sphi 0, %s27
      %s31 = sphi 0, %s30
      %s47 = sphi 0, %s31
      %s51 = sphi 0, %s51
      %s53 = sphi 0, %s51
      %s54 = sphi 0, %s53
      %s68 = sphi 0, %s54
      %s72 = sphi 0, %s72
      %s74 = sphi 0, %s72
      %s75 = sphi 0, %s74
      %s89 = sphi 0, %s75
      %s93 = sphi 0, %s93
      %s95 = sphi 0, %s93
      %s96 = sphi 0, %s95
      %s110 = sphi 0, %s96
      %s116 = sphi 0, %s118
      %s119 = sphi 0, %s116
      %s120 = sphi 0, %s119
      %s136 = sphi 0, %s120
    $region4: #{tpu_custom_call.1} parent=1 // loop_header_branch
      %20 = sbr.rel (%p18) target = $region8
    $region5: #{tpu_custom_call.1} parent=1 // loop_body
      %s22 = ssub.s32 %s17, 1
      %s23 = ssub.s32 %s17, 2
      %s24 = sadd.s32 %s17, 1
      %s25 = ssub.s32 %s17, %s24
      %p26 = scmp.eq.s32.totalorder %s25, 0
      %s28 = sadd.s32 %s27, 1
      %s29 = scalar_select %p26, %s27, %s28
      %p32 = pneg %p26
      %p33 = scmp.eq.s32.totalorder %s17, 1
      %p34 = por %p32, %p33
      %p35 = scmp.ne.s32.totalorder %s27, %s30
      %p36 = scmp.eq.s32.totalorder %s17, 0
      %p37 = por %p35, %p36
      %p38 = scmp.ne.s32.totalorder %s27, %s30
      %p39 = scmp.eq.s32.totalorder %s22, 1
      %p40 = por %p38, %p39
      %p41 = scmp.ne.s32.totalorder %s30, %s31
      %p42 = scmp.eq.s32.totalorder %s22, 0
      %p43 = por %p41, %p42
      %p44 = scmp.ne.s32.totalorder %s30, %s31
      %p45 = scmp.eq.s32.totalorder %s23, 1
      %p46 = por %p44, %p45
      %p48 = scmp.ne.s32.totalorder %s31, %s47
      %p49 = scmp.eq.s32.totalorder %s23, 0
      %p50 = por %p48, %p49
      %s52 = sadd.s32 %s51, 1
      %p55 = scmp.eq.s32.totalorder %s17, 1
      %p56 = scmp.ne.s32.totalorder %s51, %s53
      %p57 = scmp.eq.s32.totalorder %s17, 0
      %p58 = por %p56, %p57
      %p59 = scmp.ne.s32.totalorder %s51, %s53
      %p60 = scmp.eq.s32.totalorder %s22, 1
      %p61 = por %p59, %p60
      %p62 = scmp.ne.s32.totalorder %s53, %s54
      %p63 = scmp.eq.s32.totalorder %s22, 0
      %p64 = por %p62, %p63
      %p65 = scmp.ne.s32.totalorder %s53, %s54
      %p66 = scmp.eq.s32.totalorder %s23, 1
      %p67 = por %p65, %p66
      %p69 = scmp.ne.s32.totalorder %s54, %s68
      %p70 = scmp.eq.s32.totalorder %s23, 0
      %p71 = por %p69, %p70
      %s73 = sadd.s32 %s72, 1
      %p76 = scmp.eq.s32.totalorder %s17, 1
      %p77 = scmp.ne.s32.totalorder %s72, %s74
      %p78 = scmp.eq.s32.totalorder %s17, 0
      %p79 = por %p77, %p78
      %p80 = scmp.ne.s32.totalorder %s72, %s74
      %p81 = scmp.eq.s32.totalorder %s22, 1
      %p82 = por %p80, %p81
      %p83 = scmp.ne.s32.totalorder %s74, %s75
      %p84 = scmp.eq.s32.totalorder %s22, 0
      %p85 = por %p83, %p84
      %p86 = scmp.ne.s32.totalorder %s74, %s75
      %p87 = scmp.eq.s32.totalorder %s23, 1
      %p88 = por %p86, %p87
      %p90 = scmp.ne.s32.totalorder %s75, %s89
      %p91 = scmp.eq.s32.totalorder %s23, 0
      %p92 = por %p90, %p91
      %s94 = sadd.s32 %s93, 1
      %p97 = scmp.eq.s32.totalorder %s17, 1
      %p98 = scmp.ne.s32.totalorder %s93, %s95
      %p99 = scmp.eq.s32.totalorder %s17, 0
      %p100 = por %p98, %p99
      %p101 = scmp.ne.s32.totalorder %s93, %s95
      %p102 = scmp.eq.s32.totalorder %s22, 1
      %p103 = por %p101, %p102
      %p104 = scmp.ne.s32.totalorder %s95, %s96
      %p105 = scmp.eq.s32.totalorder %s22, 0
      %p106 = por %p104, %p105
      %p107 = scmp.ne.s32.totalorder %s95, %s96
      %p108 = scmp.eq.s32.totalorder %s23, 1
      %p109 = por %p107, %p108
      %p111 = scmp.ne.s32.totalorder %s96, %s110
      %p112 = scmp.eq.s32.totalorder %s23, 0
      %p113 = por %p111, %p112
      %s114 = ssub.s32 %s17, %s24
      %p115 = scmp.eq.s32.totalorder %s114, 0
      %s117 = sadd.s32 %s116, 1
      %s118 = scalar_select %p115, %s116, %s117
      %p121 = pneg %p115
      %p122 = scmp.eq.s32.totalorder %s17, 1
      %p123 = por %p121, %p122
      %p124 = scmp.ne.s32.totalorder %s116, %s119
      %p125 = scmp.eq.s32.totalorder %s17, 0
      %p126 = por %p124, %p125
      %p127 = scmp.ne.s32.totalorder %s116, %s119
      %p128 = scmp.eq.s32.totalorder %s22, 1
      %p129 = por %p127, %p128
      %p130 = scmp.ne.s32.totalorder %s119, %s120
      %p131 = scmp.eq.s32.totalorder %s22, 0
      %p132 = por %p130, %p131
      %p133 = scmp.ne.s32.totalorder %s119, %s120
      %p134 = scmp.eq.s32.totalorder %s23, 1
      %p135 = por %p133, %p134
      %p137 = scmp.ne.s32.totalorder %s120, %s136
      %p138 = scmp.eq.s32.totalorder %s23, 0
      %p139 = por %p137, %p138
      %p140 = scmp.le.s32.totalorder 1, %s17
      %p141 = scmp.lt.s32.totalorder %s17, 3
      %p142 = pnand %p140, %p141
      %p143 = pneg %p142
      // Predicated region
      $region9: #{tpu_custom_call.1} parent=5 // pred_check
        _
      $region10: #{tpu_custom_call.1} parent=5 // pred_check_branch
        %145 = sbr.rel (%p142) target = $region12
      $region11: #{tpu_custom_call.1} parent=5 // pred_region
        %s146 = ssub.s32 %s17, 1
        // Predicated region
        $region13: #{tpu_custom_call.1} parent=11 // pred_check
          %p147 = pneg %p64
        $region14: #{tpu_custom_call.1} parent=11 // pred_check_branch
          %149 = sbr.rel (%p147) target = $region16
        $region15: #{tpu_custom_call.1} parent=11 // pred_region
          %s151 = ssub.s32 256, 256
          %152 = vsyncadd [#allocation6], %s151
          %s153 = sshll.u32 [#allocation5], 4
          %s154 = int_to_ptr.vmem [resolvable:$true] %s153
          %159 = dma.hbm_to_vmem [thread:$0]  %s1, 256, %s154, [#allocation6], 128, 128, 8
        $region16: #{tpu_custom_call.1} parent=11 // pred_fallthru
          _
        // Predicated region
        $region17: #{tpu_custom_call.1} parent=11 // pred_check
          %p160 = pneg %p85
        $region18: #{tpu_custom_call.1} parent=11 // pred_check_branch
          %162 = sbr.rel (%p160) target = $region20
        $region19: #{tpu_custom_call.1} parent=11 // pred_region
          _
        $region20: #{tpu_custom_call.1} parent=11 // pred_fallthru
          _
        // Predicated region
        $region21: #{tpu_custom_call.1} parent=11 // pred_check
          %p163 = pneg %p106
        $region22: #{tpu_custom_call.1} parent=11 // pred_check_branch
          %165 = sbr.rel (%p163) target = $region24
        $region23: #{tpu_custom_call.1} parent=11 // pred_region
          _
        $region24: #{tpu_custom_call.1} parent=11 // pred_fallthru
          _
      $region12: #{tpu_custom_call.1} parent=5 // pred_fallthru
        _
      %p166 = scmp.lt.s32.totalorder %s17, 2
      // Predicated region
      $region25: #{tpu_custom_call.1} parent=5 // pred_check
        %p167 = pneg %p166
      $region26: #{tpu_custom_call.1} parent=5 // pred_check_branch
        %169 = sbr.rel (%p167) target = $region28
      $region27: #{tpu_custom_call.1} parent=5 // pred_region
        // Predicated region
        $region29: #{tpu_custom_call.1} parent=27 // pred_check
          %p170 = pneg %p37
        $region30: #{tpu_custom_call.1} parent=27 // pred_check_branch
          %172 = sbr.rel (%p170) target = $region32
        $region31: #{tpu_custom_call.1} parent=27 // pred_region
          %s173 = sand.u32 %s27, 1
          %s174 = scalar_lea.sflag [#allocation3], %s173
          %s175 = sand.u32 %s27, 1
          %s176 = smul.addr %s175, 16
          %s177 = scalar_lea.vmem [#allocation2], %s176
          %s179 = ssub.s32 256, 256
          %180 = vsyncadd %s174, %s179
          %s181 = smul.addr %s17, 2
          %s182 = smul.addr %s181, 128
          %s183 = scalar_lea.hbm %s0, %s182
          %s184 = sshll.u32 %s177, 4
          %s185 = int_to_ptr.vmem [resolvable:$true] %s184
          %190 = dma.hbm_to_vmem [thread:$0]  %s183, 256, %s185, %s174, 128, 128, 8
        $region32: #{tpu_custom_call.1} parent=27 // pred_fallthru
          _
      $region28: #{tpu_custom_call.1} parent=5 // pred_fallthru
        _
      %p191 = scmp.le.s32.totalorder 1, %s17
      %p192 = scmp.lt.s32.totalorder %s17, 3
      %p193 = pnand %p191, %p192
      %p194 = pneg %p193
      // Predicated region
      $region33: #{tpu_custom_call.1} parent=5 // pred_check
        _
      $region34: #{tpu_custom_call.1} parent=5 // pred_check_branch
        %196 = sbr.rel (%p193) target = $region36
      $region35: #{tpu_custom_call.1} parent=5 // pred_region
        %s197 = ssub.s32 %s17, 1
        %s198 = sand.u32 %s30, 1
        %s199 = scalar_lea.sflag [#allocation3], %s198
        %s200 = sand.u32 %s30, 1
        %s201 = smul.addr %s200, 16
        %s202 = scalar_lea.vmem [#allocation2], %s201
        // Predicated region
        $region37: #{tpu_custom_call.1} parent=35 // pred_check
          %p203 = pneg %p43
        $region38: #{tpu_custom_call.1} parent=35 // pred_check_branch
          %205 = sbr.rel (%p203) target = $region40
        $region39: #{tpu_custom_call.1} parent=35 // pred_region
          %206 = dma.done %s199, 256
        $region40: #{tpu_custom_call.1} parent=35 // pred_fallthru
          _
        // Predicated region
        $region41: #{tpu_custom_call.1} parent=35 // pred_check
          %p207 = pneg %p64
        $region42: #{tpu_custom_call.1} parent=35 // pred_check_branch
          %209 = sbr.rel (%p207) target = $region44
        $region43: #{tpu_custom_call.1} parent=35 // pred_region
          %210 = dma.done [#allocation6], 256
        $region44: #{tpu_custom_call.1} parent=35 // pred_fallthru
          _
        %s211 = sand.u32 %s30, 1
        %s212 = scalar_lea.sflag [#allocation3], %s211
        %s213 = sand.u32 %s30, 1
        %s214 = smul.addr %s213, 16
        %s215 = scalar_lea.vmem [#allocation2], %s214
        %p216 = pneg %p43
        %p217 = pneg %p40
        %p218 = pneg %p64
        %p219 = pneg %p61
        %p220 = pneg %p85
        %p221 = pneg %p82
        %p222 = pneg %p106
        %p223 = pneg %p103
        %p224 = pneg %p132
        %p225 = pneg %p129
        %s226 = sand.u32 %s119, 1
        %s227 = scalar_lea.sflag [#allocation4], %s226
        %s228 = sand.u32 %s119, 1
        %s229 = smul.addr %s228, 8
        %s230 = scalar_lea.vmem [#allocation7], %s229
        %v231 = vld [vmem:[%s202] sm:$0xff]
        %v232 = vld [vmem:[%s202 + $0x8] sm:$0xff]
        %v233 = vld [vmem:[#allocation5] sm:$0xff]
        %v234 = vld [vmem:[#allocation5 + $0x8] sm:$0xff]
        %v235 = vadd.f32 %v231, %v233
        %v236 = vadd.f32 %v232, %v234
        %v237 = vld [vmem:[%s2] sm:$0x1]
        %v238 = vld [vmem:[%s3] sm:$0x1]
        %vm239 = vcmask 261120
        %v240 = vsel %vm239, %v235, 0.0
        %241 = vadd.xlane.f32.xlu0 %v240
        %v242 = vpop.xlane.xlu0 %241
        %v243 = vsel %vm239, %v236, 0.0
        %244 = vadd.xlane.f32.xlu0 %v243
        %v245 = vpop.xlane.xlu0 %244
        %v246 = vrcp.pop 32.0
        %v247 = vmul.f32 %v242, %v246
        %v248 = vmul.f32 %v245, %v246
        %v249 = vsub.f32 %v235, %v247
        %v250 = vsub.f32 %v236, %v248
        %v251 = vmul.f32 %v249, %v249
        %v252 = vmul.f32 %v250, %v250
        %v253 = vsel %vm239, %v251, 0.0
        %254 = vadd.xlane.f32.xlu0 %v253
        %v255 = vpop.xlane.xlu0 %254
        %v256 = vsel %vm239, %v252, 0.0
        %257 = vadd.xlane.f32.xlu0 %v256
        %v258 = vpop.xlane.xlu0 %257
        %v259 = vmul.f32 %v255, %v246
        %v260 = vmul.f32 %v258, %v246
        %v261 = vadd.f32 %v259, 1e-06
        %v262 = vadd.f32 %v260, 1e-06
        %v263 = vrsqrt.pop %v261
        %v264 = vrsqrt.pop %v262
        %v265 = vmul.f32 %v249, %v263
        %v266 = vmul.f32 %v250, %v264
        %v268 = vlaneseq
        %v269 = vshrl.u32 %v268, 7
        %v270 = vsub.s32 0, %v269
        %v271 = vrot.slane %v237, %v270
        %v273 = vmul.f32 %v265, %v271
        %v274 = vmul.f32 %v266, %v271
        %v276 = vlaneseq
        %v277 = vshrl.u32 %v276, 7
        %v278 = vsub.s32 0, %v277
        %v279 = vrot.slane %v238, %v278
        %v281 = vadd.f32 %v273, %v279
        %v282 = vadd.f32 %v274, %v279
        %v283 = vpack.c.bf16 %v282, %v281
        %v285 = vunpack.c.l.b16 %v283
        %v286 = vunpack.c.h.b16 %v283
        %v287 = vpack.c.b16 %v285, %v285
        %v288 = vpack.c.b16 %v286, %v286
        %vm291 = vcmask 257024
        %292 = vst.msk [vmem:[%s230] sm:$0xf] %vm291, %v287
        %293 = vst.msk [vmem:[%s230 + $0x4] sm:$0xf] %vm291, %v288
        %s294 = sand.u32 %s119, 1
        %s295 = scalar_lea.sflag [#allocation4], %s294
        %s296 = sand.u32 %s119, 1
        %s297 = smul.addr %s296, 8
        %s298 = scalar_lea.vmem [#allocation7], %s297
        // Predicated region
        $region45: #{tpu_custom_call.1} parent=35 // pred_check
          %p299 = pneg %p129
        $region46: #{tpu_custom_call.1} parent=35 // pred_check_branch
          %301 = sbr.rel (%p299) target = $region48
        $region47: #{tpu_custom_call.1} parent=35 // pred_region
          %s303 = ssub.s32 128, 128
          %304 = vsyncadd %s295, %s303
          %s305 = smul.addr %s22, 2
          %s306 = smul.addr %s305, 64
          %s307 = scalar_lea.hbm %s4, %s306
          %s308 = sshll.u32 %s298, 4
          %s309 = int_to_ptr.vmem [resolvable:$true] %s308
          %314 = dma.vmem_to_hbm [thread:$0]  %s309, 128, %s307, %s295, 64, 64, 4
        $region48: #{tpu_custom_call.1} parent=35 // pred_fallthru
          _
      $region36: #{tpu_custom_call.1} parent=5 // pred_fallthru
        _
      %p315 = scmp.le.s32.totalorder 2, %s17
      // Predicated region
      $region49: #{tpu_custom_call.1} parent=5 // pred_check
        %p316 = pneg %p315
      $region50: #{tpu_custom_call.1} parent=5 // pred_check_branch
        %318 = sbr.rel (%p316) target = $region52
      $region51: #{tpu_custom_call.1} parent=5 // pred_region
        %s319 = ssub.s32 %s17, 2
        // Predicated region
        $region53: #{tpu_custom_call.1} parent=51 // pred_check
          %p320 = pneg %p135
        $region54: #{tpu_custom_call.1} parent=51 // pred_check_branch
          %322 = sbr.rel (%p320) target = $region56
        $region55: #{tpu_custom_call.1} parent=51 // pred_region
          %s323 = sand.u32 %s120, 1
          %s324 = scalar_lea.sflag [#allocation4], %s323
          %s325 = sand.u32 %s120, 1
          %s326 = smul.addr %s325, 8
          %s327 = scalar_lea.vmem [#allocation7], %s326
          %328 = dma.done %s324, 128
        $region56: #{tpu_custom_call.1} parent=51 // pred_fallthru
          _
      $region52: #{tpu_custom_call.1} parent=5 // pred_fallthru
        _
    $region6: #{tpu_custom_call.1} parent=1 // loop_footer
      %s21 = sadd.s32 1, %s17
    $region7: #{tpu_custom_call.1} parent=1 // loop_footer_branch
      %16 = sbr.rel target = $region3
    $region8: #{tpu_custom_call.1} parent=1 // loop_exit
      _
    %329 = vsyncpa [#allocation3], 1
    %s330 = scalar_lea.sflag [#allocation3], 1
    %331 = vsyncpa %s330, 1
    %332 = vsyncpa [#allocation6], 1
    %333 = vsyncpa [#allocation4], 1
    %s334 = scalar_lea.sflag [#allocation4], 1
    %335 = vsyncpa %s334, 1

</llo_original>
